<compile_context>
chip_gen: v7x
topology: tpu7x:2x2x1
jax: 0.10.0
libtpu: 0.0.40
codegen_flags: <defaults>
</compile_context>

<pallas_src>
import functools

import jax
import jax.numpy as jnp
from jax import lax
from jax.experimental import pallas as pl
from jax.experimental.pallas import tpu as pltpu

NEG = -1.0e30  # plain Python float -> never captured as a traced constant

_VMEM_LIMIT = 32 * 1024 * 1024  # safe on v5e/v6e/v7x


def _round_up(x, m):
    return (x + m - 1) // m * m


# ----------------------------------------------------------------------------
# Kernel 1: masked MAE reduction  sum(|mel - mel_hat| * mask)
#   grid over batch; mask built in-kernel from out_lens (scalar prefetch).
# ----------------------------------------------------------------------------
def _mel_mae_kernel(out_lens_ref, mel_ref, hat_ref, sum_ref, acc_ref):
    b = pl.program_id(0)

    @pl.when(b == 0)
    def _init():
        acc_ref[...] = jnp.zeros_like(acc_ref)

    olen = out_lens_ref[b]
    mel = mel_ref[0].astype(jnp.float32)      # [C, T]
    hat = hat_ref[0].astype(jnp.float32)      # [C, T]
    col = lax.broadcasted_iota(jnp.int32, mel.shape, 1)
    mask = (col < olen).astype(jnp.float32)
    acc_ref[...] += jnp.sum(jnp.abs(mel - hat) * mask).reshape(1, 1)

    @pl.when(b == pl.num_programs(0) - 1)
    def _fin():
        sum_ref[...] = acc_ref[...]


def mel_mae_sum(mel, mel_hat, out_lens):
    B, C, T = mel.shape
    s = pl.pallas_call(
        _mel_mae_kernel,
        out_shape=jax.ShapeDtypeStruct((1, 1), jnp.float32),
        grid_spec=pltpu.PrefetchScalarGridSpec(
            num_scalar_prefetch=1,
            grid=(B,),
            in_specs=[pl.BlockSpec((1, C, T), lambda b, ol: (b, 0, 0)),
                      pl.BlockSpec((1, C, T), lambda b, ol: (b, 0, 0))],
            out_specs=pl.BlockSpec((1, 1), lambda b, ol: (0, 0)),
            scratch_shapes=[pltpu.VMEM((1, 1), jnp.float32)]),
        compiler_params=pltpu.CompilerParams(
            dimension_semantics=("arbitrary",),
            vmem_limit_bytes=_VMEM_LIMIT),
    )(out_lens.astype(jnp.int32), mel, mel_hat)
    return s[0, 0]


# ----------------------------------------------------------------------------
# Kernel 2: attention binarization loss (BCE against ones where hard == 1)
#   row-tiled grid, accumulator scratch; hard attention itself is the selector.
# ----------------------------------------------------------------------------
def _binarization_kernel(hard_ref, soft_ref, num_ref, cnt_ref, nacc_ref, cacc_ref):
    i = pl.program_id(0)

    @pl.when(i == 0)
    def _init():
        nacc_ref[...] = jnp.zeros_like(nacc_ref)
        cacc_ref[...] = jnp.zeros_like(cacc_ref)

    hard = hard_ref[...].astype(jnp.float32)
    soft = soft_ref[...].astype(jnp.float32)
    # BCE(x, target=1) = -log(x); PyTorch clamps log at -100.
    nll = jnp.minimum(-jnp.log(jnp.maximum(soft, 1e-37)), 100.0)
    nacc_ref[...] += jnp.sum(jnp.where(hard != 0, nll, 0.0)).reshape(1, 1)
    cacc_ref[...] += jnp.sum(hard).reshape(1, 1)

    @pl.when(i == pl.num_programs(0) - 1)
    def _fin():
        num_ref[...] = nacc_ref[...]
        cnt_ref[...] = cacc_ref[...]


def binarization_loss(hard, soft):
    t_in = soft.shape[-1]
    h2 = hard.reshape(-1, t_in)
    s2 = soft.reshape(-1, t_in)
    rows = h2.shape[0]

    tile_r = min(512, _round_up(rows, 8))
    rows_p = _round_up(rows, tile_r)
    if rows_p != rows:
        # hard padded with 0 (contributes nothing); soft padded with 1 (log = 0)
        h2 = jnp.pad(h2, ((0, rows_p - rows), (0, 0)), constant_values=0)
        s2 = jnp.pad(s2, ((0, rows_p - rows), (0, 0)), constant_values=1)
    n_tiles = rows_p // tile_r

    num, cnt = pl.pallas_call(
        _binarization_kernel,
        out_shape=(jax.ShapeDtypeStruct((1, 1), jnp.float32),
                   jax.ShapeDtypeStruct((1, 1), jnp.float32)),
        grid_spec=pltpu.PrefetchScalarGridSpec(
            num_scalar_prefetch=0,
            grid=(n_tiles,),
            in_specs=[pl.BlockSpec((tile_r, t_in), lambda i: (i, 0)),
                      pl.BlockSpec((tile_r, t_in), lambda i: (i, 0))],
            out_specs=(pl.BlockSpec((1, 1), lambda i: (0, 0)),
                       pl.BlockSpec((1, 1), lambda i: (0, 0))),
            scratch_shapes=[pltpu.VMEM((1, 1), jnp.float32),
                            pltpu.VMEM((1, 1), jnp.float32)]),
        compiler_params=pltpu.CompilerParams(
            dimension_semantics=("arbitrary",),
            vmem_limit_bytes=_VMEM_LIMIT),
    )(h2, s2)
    return num[0, 0] / jnp.maximum(cnt[0, 0], 1.0)


# ----------------------------------------------------------------------------
# Kernel 3: per-batch masked log-softmax over the CTC class dim (blank + keys)
#   class dim is padded to a multiple of 128 in the wrapper (lane-dense I/O);
#   validity mask (col < key_len + 1) is the source of truth in-kernel.
# ----------------------------------------------------------------------------
def _ctc_logsoftmax_kernel(keylen_ref, x_ref, o_ref):
    b = pl.program_id(0)
    kl = keylen_ref[b]
    x = x_ref[0].astype(jnp.float32)          # [T_out, C_pad]
    col = lax.broadcasted_iota(jnp.int32, x.shape, 1)
    valid = col < (kl + 1)
    xm = jnp.where(valid, x, NEG)
    m = jnp.max(xm, axis=-1, keepdims=True)
    e = jnp.where(valid, jnp.exp(xm - m), 0.0)
    lse = m + jnp.log(jnp.sum(e, axis=-1, keepdims=True))
    o_ref[0] = jnp.where(valid, x - lse, NEG)


def ctc_logsoftmax(x_padded, key_lens):
    # x_padded: [B, T_out, C_pad] (class 0 = blank, C_pad multiple of 128)
    B, t_out, c_pad = x_padded.shape
    return pl.pallas_call(
        _ctc_logsoftmax_kernel,
        out_shape=jax.ShapeDtypeStruct((B, t_out, c_pad), jnp.float32),
        grid_spec=pltpu.PrefetchScalarGridSpec(
            num_scalar_prefetch=1,
            grid=(B,),
            in_specs=[pl.BlockSpec((1, t_out, c_pad), lambda b, kl: (b, 0, 0))],
            out_specs=pl.BlockSpec((1, t_out, c_pad), lambda b, kl: (b, 0, 0)),
        ),
        compiler_params=pltpu.CompilerParams(
            dimension_semantics=("parallel",),
            vmem_limit_bytes=_VMEM_LIMIT),
    )(key_lens.astype(jnp.int32), x_padded)


# ----------------------------------------------------------------------------
# CTC forward DP (sequential alpha recursion) in plain JAX
# TODO(synk): inherently sequential; kept as lax.fori_loop rather than Pallas.
# ----------------------------------------------------------------------------
def _lse2(a, b):
    m = jnp.maximum(a, b)
    return m + jnp.log(jnp.exp(a - m) + jnp.exp(b - m))


def _lse3(a, b, c):
    m = jnp.maximum(jnp.maximum(a, b), c)
    return m + jnp.log(jnp.exp(a - m) + jnp.exp(b - m) + jnp.exp(c - m))


def _ctc_single(logp, key_len, query_len, t_in):
    # logp: [T_out, C_pad] masked log-softmax; target = [1..key_len], blank = 0
    t_out = logp.shape[0]
    S = 2 * t_in + 1
    s_idx = jnp.arange(S)
    labels = jnp.where(s_idx % 2 == 0, 0, (s_idx + 1) // 2)
    valid_state = s_idx < (2 * key_len + 1)
    kl_safe = jnp.maximum(key_len, 1)

    alpha = jnp.full((S,), NEG, jnp.float32)
    alpha = alpha.at[0].set(logp[0, 0])
    alpha = alpha.at[1].set(jnp.where(key_len >= 1, logp[0, 1], NEG))
    alpha = jnp.where(valid_state, alpha, NEG)

    pad1 = jnp.full((1,), NEG, jnp.float32)
    pad2 = jnp.full((2,), NEG, jnp.float32)
    allow_skip = (s_idx % 2 == 1)  # all target labels distinct -> skips allowed

    def body(t, a):
        p1 = jnp.concatenate([pad1, a[:-1]])
        p2 = jnp.where(allow_skip, jnp.concatenate([pad2, a[:-2]]), NEG)
        new = _lse3(a, p1, p2) + logp[t, labels]
        new = jnp.where(valid_state, new, NEG)
        return jnp.where(t < query_len, new, a)

    alpha = lax.fori_loop(1, t_out, body, alpha)
    final = _lse2(alpha[2 * kl_safe], alpha[2 * kl_safe - 1])
    # nn.CTCLoss(reduction='mean') with per-call batch of 1: divide by target length
    loss = -final / kl_safe.astype(jnp.float32)
    # zero_infinity=True
    return jnp.where(final > -1e29, loss, 0.0)


def ctc_cost(attn_logprob, in_lens, out_lens, blank_logprob=-1.0):
    B, _, t_out, t_in = attn_logprob.shape
    C = t_in + 1
    c_pad = _round_up(C, 128)
    x = attn_logprob[:, 0, :, :]                                  # [B, T_out, T_in]
    x = jnp.pad(x, ((0, 0), (0, 0), (1, 0)), constant_values=blank_logprob)
    if c_pad > C:   # lane-dense padding; padded cols masked in-kernel
        x = jnp.pad(x, ((0, 0), (0, 0), (0, c_pad - C)), constant_values=0.0)
    logp = ctc_logsoftmax(x, in_lens)                             # Pallas kernel
    losses = jax.vmap(functools.partial(_ctc_single, t_in=t_in))(
        logp, in_lens.astype(jnp.int32), out_lens.astype(jnp.int32))
    return jnp.mean(losses)


# ----------------------------------------------------------------------------
# RADTTSDeterministicLoss forward
# ----------------------------------------------------------------------------
def radtts_deterministic_loss(model_output, in_lens, out_lens, global_step, *,
                              kl_loss_start_iter=5000,
                              binarization_loss_weight=1.0,
                              ctc_loss_weight=0.1,
                              blank_logprob=-1.0):
    loss_dict = {}

    mel = model_output.get('mel', None)
    if mel is not None and len(mel):
        mel_hat = model_output['mel_hat']
        B, C, T = mel.shape
        mae_sum = mel_mae_sum(mel, mel_hat, out_lens)             # Pallas kernel
        mask_sum = jnp.sum(jnp.minimum(out_lens, T)).astype(jnp.float32)
        loss_mel = mae_sum / (float(C) * mask_sum)
        loss_dict['mel_mae_loss'] = (loss_mel, 1.0)

    ctc = ctc_cost(model_output['attn_logprob'], in_lens, out_lens, blank_logprob)
    loss_dict['loss_ctc'] = (ctc, ctc_loss_weight)

    # global_step is a static Python int by contract (matches the PyTorch module)
    if global_step > kl_loss_start_iter:
        bin_loss = binarization_loss(model_output['attn'],
                                     model_output['attn_soft'])   # Pallas kernel
        loss_dict['binarization_loss'] = (bin_loss, binarization_loss_weight)
    else:
        loss_dict['binarization_loss'] = (0.0, binarization_loss_weight)

    return loss_dict


# ----------------------------------------------------------------------------
if __name__ == "__main__":
    key = jax.random.PRNGKey(0)
    k0, k1, k2 = jax.random.split(key, 3)

    B, C, T = 2, 4, 16          # batch, mel channels (n_dims), mel frames
    t_out, t_in = 16, 8         # attention query / key lengths (max)

    mel = jax.random.normal(k0, (B, C, T), jnp.float32)
    mel_hat = mel + 0.1 * jax.random.normal(k1, (B, C, T), jnp.float32)

    attn_logits = jax.random.normal(k2, (B, 1, t_out, t_in), jnp.float32)
    attn_soft = jax.nn.softmax(attn_logits, axis=-1)
    attn_hard = jax.nn.one_hot(jnp.argmax(attn_soft, axis=-1), t_in,
                               dtype=jnp.float32)                 # [B,1,T_out,T_in]
    attn_logprob = jax.nn.log_softmax(attn_logits, axis=-1)

    in_lens = jnp.array([8, 6], jnp.int32)
    out_lens = jnp.array([16, 12], jnp.int32)
    global_step = 10000

    model_output = {
        'mel': mel,
        'mel_hat': mel_hat,
        'attn': attn_hard,
        'attn_soft': attn_soft,
        'attn_logprob': attn_logprob,
    }

    loss_dict = radtts_deterministic_loss(model_output, in_lens, out_lens,
                                          global_step)

    vals = tuple(jnp.asarray(v[0]) for v in loss_dict.values())
    vals = jax.block_until_ready(vals)
    assert all(bool(jnp.isfinite(v)) for v in vals)
    print("KERNEL_OK")
</pallas_src>

<mosaic_0001>
module attributes {stable_mosaic.version = 11 : i64} {
  func.func @_mel_mae_kernel(%arg0: i32, %arg1: memref<2xi32, #tpu.memory_space<smem>>, %arg2: memref<1x4x16xf32, #tpu.memory_space<vmem>>, %arg3: memref<1x4x16xf32, #tpu.memory_space<vmem>>, %arg4: memref<1x1xf32, #tpu.memory_space<vmem>>, %arg5: memref<1x1xf32, #tpu.memory_space<vmem>>) attributes {dimension_semantics = [#tpu.dimension_semantics<arbitrary>], iteration_bounds = array<i64: 2>, scalar_prefetch = 1 : i64, scratch_operands = 1 : i64, tpu.core_type = #tpu.core_type<tc>, window_params = [{transform_indices = @transform_0, window_bounds = array<i64: 1, 4, 16>}, {transform_indices = @transform_1, window_bounds = array<i64: 1, 4, 16>}, {pipeline_mode = #tpu.pipeline_mode<synchronous>, transform_indices = @transform_2, window_bounds = array<i64: 1, 1>}]} {
    %c0_i32 = arith.constant 0 : i32
    %0 = arith.cmpi eq, %arg0, %c0_i32 : i32
    %1 = arith.extui %0 : i1 to i32
    %c0_i32_0 = arith.constant 0 : i32
    %2 = arith.cmpi ne, %1, %c0_i32_0 : i32
    scf.if %2 {
      %cst_11 = arith.constant 0.000000e+00 : f32
      %28 = vector.broadcast %cst_11 : f32 to vector<1x1xf32>
      %c0_12 = arith.constant 0 : index
      %c0_13 = arith.constant 0 : index
      %29 = vector.load %arg5[%c0_12, %c0_13] : memref<1x1xf32, #tpu.memory_space<vmem>>, vector<1x1xf32>
      tpu.vector_store %arg5[%c0_12, %c0_13], %28 {strides = array<i32>} : memref<1x1xf32, #tpu.memory_space<vmem>>, vector<1x1xf32>,
    } else {
    }
    %3 = arith.index_cast %arg0 : i32 to index
    %4 = memref.load %arg1[%3] : memref<2xi32, #tpu.memory_space<smem>>
    %c0 = arith.constant 0 : index
    %c0_1 = arith.constant 0 : index
    %c0_2 = arith.constant 0 : index
    %5 = vector.load %arg2[%c0, %c0_1, %c0_2] : memref<1x4x16xf32, #tpu.memory_space<vmem>>, vector<1x4x16xf32>
    %6 = vector.shape_cast %5 : vector<1x4x16xf32> to vector<4x16xf32>
    %c0_3 = arith.constant 0 : index
    %c0_4 = arith.constant 0 : index
    %c0_5 = arith.constant 0 : index
    %7 = vector.load %arg3[%c0_3, %c0_4, %c0_5] : memref<1x4x16xf32, #tpu.memory_space<vmem>>, vector<1x4x16xf32>
    %8 = vector.shape_cast %7 : vector<1x4x16xf32> to vector<4x16xf32>
    %9 = tpu.iota {dimensions = array<i32: 1>} : vector<4x16xi32>
    %10 = vector.broadcast %4 : i32 to vector<4x16xi32>
    %11 = arith.cmpi slt, %9, %10 : vector<4x16xi32>
    %12 = arith.extui %11 : vector<4x16xi1> to vector<4x16xi32>
    %13 = arith.sitofp %12 : vector<4x16xi32> to vector<4x16xf32>
    %c0_6 = arith.constant 0 : index
    %c0_7 = arith.constant 0 : index
    %14 = vector.load %arg5[%c0_6, %c0_7] : memref<1x1xf32, #tpu.memory_space<vmem>>, vector<1x1xf32>
    %15 = arith.subf %6, %8 : vector<4x16xf32>
    %16 = math.absf %15 : vector<4x16xf32>
    %17 = arith.mulf %16, %13 : vector<4x16xf32>
    %18 = vector.shape_cast %17 : vector<4x16xf32> to vector<1x4x16xf32>
    %cst = arith.constant dense<0.000000e+00> : vector<1xf32>
    %19 = vector.multi_reduction <add>, %18, %cst [1, 2] : vector<1x4x16xf32> to vector<1xf32>
    %20 = vector.shape_cast %19 : vector<1xf32> to vector<1x1x1xf32>
    %21 = vector.extract %20[0, 0, 0] : f32 from vector<1x1x1xf32>
    %22 = vector.broadcast %21 : f32 to vector<1x1xf32>
    %23 = arith.addf %14, %22 : vector<1x1xf32>
    %c0_8 = arith.constant 0 : index
    %c0_9 = arith.constant 0 : index
    %24 = vector.load %arg5[%c0_8, %c0_9] : memref<1x1xf32, #tpu.memory_space<vmem>>, vector<1x1xf32>
    tpu.vector_store %arg5[%c0_8, %c0_9], %23 {strides = array<i32>} : memref<1x1xf32, #tpu.memory_space<vmem>>, vector<1x1xf32>,
    %c1_i32 = arith.constant 1 : i32
    %25 = arith.cmpi eq, %arg0, %c1_i32 : i32
    %26 = arith.extui %25 : i1 to i32
    %c0_i32_10 = arith.constant 0 : i32
    %27 = arith.cmpi ne, %26, %c0_i32_10 : i32
    scf.if %27 {
      %c0_11 = arith.constant 0 : index
      %c0_12 = arith.constant 0 : index
      %28 = vector.load %arg5[%c0_11, %c0_12] : memref<1x1xf32, #tpu.memory_space<vmem>>, vector<1x1xf32>
      %c0_13 = arith.constant 0 : index
      %c0_14 = arith.constant 0 : index
      %29 = vector.load %arg4[%c0_13, %c0_14] : memref<1x1xf32, #tpu.memory_space<vmem>>, vector<1x1xf32>
      tpu.vector_store %arg4[%c0_13, %c0_14], %28 {strides = array<i32>} : memref<1x1xf32, #tpu.memory_space<vmem>>, vector<1x1xf32>,
    } else {
    }
    return
  }
  func.func @transform_0(%arg0: i32, %arg1: memref<2xi32, #tpu.memory_space<smem>>) -> (i32, i32, i32) {
    %c0_i32 = arith.constant 0 : i32
    %c0_i32_0 = arith.constant 0 : i32
    %c0_i32_1 = arith.constant 0 : i32
    return %arg0, %c0_i32, %c0_i32_0 : i32, i32, i32
  }
  func.func @transform_1(%arg0: i32, %arg1: memref<2xi32, #tpu.memory_space<smem>>) -> (i32, i32, i32) {
    %c0_i32 = arith.constant 0 : i32
    %c0_i32_0 = arith.constant 0 : i32
    %c0_i32_1 = arith.constant 0 : i32
    return %arg0, %c0_i32, %c0_i32_0 : i32, i32, i32
  }
  func.func @transform_2(%arg0: i32, %arg1: memref<2xi32, #tpu.memory_space<smem>>) -> (i32, i32) {
    %c0_i32 = arith.constant 0 : i32
    %c0_i32_0 = arith.constant 0 : i32
    %c0_i32_1 = arith.constant 0 : i32
    return %c0_i32, %c0_i32_0 : i32, i32
  }
}

</mosaic_0001>

<llo_original>
// kernel: tpu_custom_call.1
$region0: #{tpu_custom_call.1}
  #allocation0 [shape = 'u32[]', space=smem, size = 0x4, offset = 0x4, fixed_abs, tag = 'smem constant byte address 0x4 - core index']
  #allocation1 [shape = 'u32[144,128]{1,0:T(1,128)}', space=vmem, size = 0x12000, scoped, tag = 'internal scratch']
  #allocation2 [shape = 'f32[1,1]{1,0:T(1,128)}', space=vmem, size = 0x200, scoped, tag = 'scratch operand']
  #allocation3 [shape = 's32[1]{0}', space=sflag, size = 0x4, scoped, tag = 'scoped memory for tpu_custom_call.1']
  #allocation4 [shape = 'u8[512]{0}', space=smem, size = 0x200, scoped, tag = 'prefetched SMEM operand 0']
  %s0 = inlined_call_operand.hbm [shape: s32[2], index: 0, kind: input, shape index: {}]
  %s1 = inlined_call_operand.hbm [shape: f32[2,4,16], index: 1, kind: input, shape index: {}]
  %s2 = inlined_call_operand.hbm [shape: f32[2,4,16], index: 2, kind: input, shape index: {}]
  %s3 = inlined_call_operand.hbm [shape: f32[1,1], index: 3, kind: output, shape index: {}]
  %s4 = sld [smem:[#allocation0]]
  $region57: #{tpu_custom_call.1} parent=0
    _
  %s6 = ssub.s32 1, %s4
  %s7 = scalar_select 0, %s6, %s4
  %9 = dma.hbm_to_smem %s0, 16, [#allocation4], [#allocation3]
  %10 = dma.done [#allocation3], 16
  %11 = sfence
  $region1: #{tpu_custom_call.1} parent=0
    #allocation5 [shape = 'u8[4096]{0}', space=vmem, size = 0x1000, scoped, tag = 'input window, operand 1']
    #allocation6 [shape = 's32[2]{0}', space=sflag, size = 0x8, scoped, tag = 'scoped memory for tpu_custom_call.1']
    #allocation7 [shape = 's32[2]{0}', space=sflag, size = 0x8, scoped, tag = 'scoped memory for tpu_custom_call.1']
    #allocation8 [shape = 'u8[4096]{0}', space=vmem, size = 0x1000, scoped, tag = 'input window, operand 2']
    #allocation9 [shape = 's32[2]{0}', space=sflag, size = 0x8, scoped, tag = 'scoped memory for tpu_custom_call.1']
    #allocation10 [shape = 'u8[512]{0}', space=vmem, size = 0x400, scoped, tag = 'output window, operand 0, single buffered']
    %12 = vsyncpa [#allocation6], 0
    %s13 = scalar_lea.sflag [#allocation6], 1
    %14 = vsyncpa %s13, 0
    %15 = vsyncpa [#allocation9], 0
    %s16 = scalar_lea.sflag [#allocation9], 1
    %17 = vsyncpa %s16, 0
    %18 = vsyncpa [#allocation7], 0
    loop: start=0, step=1, limit=4
    $region2: #{tpu_custom_call.1} parent=1 // loop_pre_header
      _
    $region3: #{tpu_custom_call.1} parent=1 // loop_header
      %s20 = sphi 0, %s24
      %p21 = scmp.ge.s32.totalorder %s20, 4
      %s30 = sphi 0, %s32
      %s33 = sphi 0, %s30
      %s34 = sphi 0, %s33
      %s50 = sphi 0, %s34
      %s56 = sphi 0, %s58
      %s59 = sphi 0, %s56
      %s60 = sphi 0, %s59
      %s76 = sphi 0, %s60
      %s80 = sphi 0, %s80
      %s82 = sphi 0, %s80
      %s83 = sphi 0, %s82
      %s97 = sphi 0, %s83
    $region4: #{tpu_custom_call.1} parent=1 // loop_header_branch
      %23 = sbr.rel (%p21) target = $region8
    $region5: #{tpu_custom_call.1} parent=1 // loop_body
      %s25 = ssub.s32 %s20, 1
      %s26 = ssub.s32 %s20, 2
      %s27 = sadd.s32 %s20, 1
      %s28 = ssub.s32 %s20, %s27
      %p29 = scmp.eq.s32.totalorder %s28, 0
      %s31 = sadd.s32 %s30, 1
      %s32 = scalar_select %p29, %s30, %s31
      %p35 = pneg %p29
      %p36 = scmp.eq.s32.totalorder %s20, 1
      %p37 = por %p35, %p36
      %p38 = scmp.ne.s32.totalorder %s30, %s33
      %p39 = scmp.eq.s32.totalorder %s20, 0
      %p40 = por %p38, %p39
      %p41 = scmp.ne.s32.totalorder %s30, %s33
      %p42 = scmp.eq.s32.totalorder %s25, 1
      %p43 = por %p41, %p42
      %p44 = scmp.ne.s32.totalorder %s33, %s34
      %p45 = scmp.eq.s32.totalorder %s25, 0
      %p46 = por %p44, %p45
      %p47 = scmp.ne.s32.totalorder %s33, %s34
      %p48 = scmp.eq.s32.totalorder %s26, 1
      %p49 = por %p47, %p48
      %p51 = scmp.ne.s32.totalorder %s34, %s50
      %p52 = scmp.eq.s32.totalorder %s26, 0
      %p53 = por %p51, %p52
      %s54 = ssub.s32 %s20, %s27
      %p55 = scmp.eq.s32.totalorder %s54, 0
      %s57 = sadd.s32 %s56, 1
      %s58 = scalar_select %p55, %s56, %s57
      %p61 = pneg %p55
      %p62 = scmp.eq.s32.totalorder %s20, 1
      %p63 = por %p61, %p62
      %p64 = scmp.ne.s32.totalorder %s56, %s59
      %p65 = scmp.eq.s32.totalorder %s20, 0
      %p66 = por %p64, %p65
      %p67 = scmp.ne.s32.totalorder %s56, %s59
      %p68 = scmp.eq.s32.totalorder %s25, 1
      %p69 = por %p67, %p68
      %p70 = scmp.ne.s32.totalorder %s59, %s60
      %p71 = scmp.eq.s32.totalorder %s25, 0
      %p72 = por %p70, %p71
      %p73 = scmp.ne.s32.totalorder %s59, %s60
      %p74 = scmp.eq.s32.totalorder %s26, 1
      %p75 = por %p73, %p74
      %p77 = scmp.ne.s32.totalorder %s60, %s76
      %p78 = scmp.eq.s32.totalorder %s26, 0
      %p79 = por %p77, %p78
      %s81 = sadd.s32 %s80, 1
      %p84 = scmp.eq.s32.totalorder %s20, 1
      %p85 = scmp.ne.s32.totalorder %s80, %s82
      %p86 = scmp.eq.s32.totalorder %s20, 0
      %p87 = por %p85, %p86
      %p88 = scmp.ne.s32.totalorder %s80, %s82
      %p89 = scmp.eq.s32.totalorder %s25, 1
      %p90 = por %p88, %p89
      %p91 = scmp.ne.s32.totalorder %s82, %s83
      %p92 = scmp.eq.s32.totalorder %s25, 0
      %p93 = por %p91, %p92
      %p94 = scmp.ne.s32.totalorder %s82, %s83
      %p95 = scmp.eq.s32.totalorder %s26, 1
      %p96 = por %p94, %p95
      %p98 = scmp.ne.s32.totalorder %s83, %s97
      %p99 = scmp.eq.s32.totalorder %s26, 0
      %p100 = por %p98, %p99
      %p101 = scmp.le.s32.totalorder 1, %s20
      %p102 = scmp.lt.s32.totalorder %s20, 3
      %p103 = pnand %p101, %p102
      %p104 = pneg %p103
      // Predicated region
      $region9: #{tpu_custom_call.1} parent=5 // pred_check
        _
      $region10: #{tpu_custom_call.1} parent=5 // pred_check_branch
        %106 = sbr.rel (%p103) target = $region12
      $region11: #{tpu_custom_call.1} parent=5 // pred_region
        %s107 = ssub.s32 %s20, 1
      $region12: #{tpu_custom_call.1} parent=5 // pred_fallthru
        _
      %p108 = scmp.lt.s32.totalorder %s20, 2
      // Predicated region
      $region13: #{tpu_custom_call.1} parent=5 // pred_check
        %p109 = pneg %p108
      $region14: #{tpu_custom_call.1} parent=5 // pred_check_branch
        %111 = sbr.rel (%p109) target = $region16
      $region15: #{tpu_custom_call.1} parent=5 // pred_region
        // Predicated region
        $region17: #{tpu_custom_call.1} parent=15 // pred_check
          %p112 = pneg %p40
        $region18: #{tpu_custom_call.1} parent=15 // pred_check_branch
          %114 = sbr.rel (%p112) target = $region20
        $region19: #{tpu_custom_call.1} parent=15 // pred_region
          %s115 = sand.u32 %s30, 1
          %s116 = scalar_lea.sflag [#allocation6], %s115
          %s117 = sand.u32 %s30, 1
          %s118 = smul.addr %s117, 4
          %s119 = scalar_lea.vmem [#allocation5], %s118
          %s121 = ssub.s32 64, 64
          %122 = vsyncadd %s116, %s121
          %s123 = smul.addr %s20, 64
          %s124 = scalar_lea.hbm %s1, %s123
          %s126 = sshll.u32 %s119, 4
          %s127 = int_to_ptr.vmem [resolvable:$true] %s126
          %129 = dma.hbm_to_vmem [thread:$0]  %s124, 64, %s127, %s116
        $region20: #{tpu_custom_call.1} parent=15 // pred_fallthru
          _
        // Predicated region
        $region21: #{tpu_custom_call.1} parent=15 // pred_check
          %p130 = pneg %p66
        $region22: #{tpu_custom_call.1} parent=15 // pred_check_branch
          %132 = sbr.rel (%p130) target = $region24
        $region23: #{tpu_custom_call.1} parent=15 // pred_region
          %s133 = sand.u32 %s56, 1
          %s134 = scalar_lea.sflag [#allocation9], %s133
          %s135 = sand.u32 %s56, 1
          %s136 = smul.addr %s135, 4
          %s137 = scalar_lea.vmem [#allocation8], %s136
          %s139 = ssub.s32 64, 64
          %140 = vsyncadd %s134, %s139
          %s141 = smul.addr %s20, 64
          %s142 = scalar_lea.hbm %s2, %s141
          %s144 = sshll.u32 %s137, 4
          %s145 = int_to_ptr.vmem [resolvable:$true] %s144
          %147 = dma.hbm_to_vmem [thread:$0]  %s142, 64, %s145, %s134
        $region24: #{tpu_custom_call.1} parent=15 // pred_fallthru
          _
      $region16: #{tpu_custom_call.1} parent=5 // pred_fallthru
        _
      %p148 = scmp.le.s32.totalorder 1, %s20
      %p149 = scmp.lt.s32.totalorder %s20, 3
      %p150 = pnand %p148, %p149
      %p151 = pneg %p150
      // Predicated region
      $region25: #{tpu_custom_call.1} parent=5 // pred_check
        _
      $region26: #{tpu_custom_call.1} parent=5 // pred_check_branch
        %153 = sbr.rel (%p150) target = $region28
      $region27: #{tpu_custom_call.1} parent=5 // pred_region
        %s154 = ssub.s32 %s20, 1
        %s155 = sand.u32 %s33, 1
        %s156 = scalar_lea.sflag [#allocation6], %s155
        %s157 = sand.u32 %s33, 1
        %s158 = smul.addr %s157, 4
        %s159 = scalar_lea.vmem [#allocation5], %s158
        // Predicated region
        $region29: #{tpu_custom_call.1} parent=27 // pred_check
          %p160 = pneg %p46
        $region30: #{tpu_custom_call.1} parent=27 // pred_check_branch
          %162 = sbr.rel (%p160) target = $region32
        $region31: #{tpu_custom_call.1} parent=27 // pred_region
          %163 = dma.done %s156, 64
        $region32: #{tpu_custom_call.1} parent=27 // pred_fallthru
          _
        %s164 = sand.u32 %s59, 1
        %s165 = scalar_lea.sflag [#allocation9], %s164
        %s166 = sand.u32 %s59, 1
        %s167 = smul.addr %s166, 4
        %s168 = scalar_lea.vmem [#allocation8], %s167
        // Predicated region
        $region33: #{tpu_custom_call.1} parent=27 // pred_check
          %p169 = pneg %p72
        $region34: #{tpu_custom_call.1} parent=27 // pred_check_branch
          %171 = sbr.rel (%p169) target = $region36
        $region35: #{tpu_custom_call.1} parent=27 // pred_region
          %172 = dma.done %s165, 64
        $region36: #{tpu_custom_call.1} parent=27 // pred_fallthru
          _
        %s173 = sand.u32 %s33, 1
        %s174 = scalar_lea.sflag [#allocation6], %s173
        %s175 = sand.u32 %s33, 1
        %s176 = smul.addr %s175, 4
        %s177 = scalar_lea.vmem [#allocation5], %s176
        %p178 = pneg %p46
        %p179 = pneg %p43
        %s180 = sand.u32 %s59, 1
        %s181 = scalar_lea.sflag [#allocation9], %s180
        %s182 = sand.u32 %s59, 1
        %s183 = smul.addr %s182, 4
        %s184 = scalar_lea.vmem [#allocation8], %s183
        %p185 = pneg %p72
        %p186 = pneg %p69
        %p187 = pneg %p93
        %p188 = pneg %p90
        %p189 = scmp.eq.s32.totalorder %s25, 0
        // Predicated region
        $region37: #{tpu_custom_call.1} parent=27 // pred_check
          %p190 = pneg %p189
        $region38: #{tpu_custom_call.1} parent=27 // pred_check_branch
          %192 = sbr.rel (%p190) target = $region40
        $region39: #{tpu_custom_call.1} parent=27 // pred_region
          %vm193 = vcmask 0
          %194 = vst.msk [vmem:[#allocation2] sm:$0x1] %vm193, 0.0
        $region40: #{tpu_custom_call.1} parent=27 // pred_fallthru
          _
        %s195 = sld [smem:[#allocation4 + %s25]]
        %v196 = vld [vmem:[%s159] sm:$0xf]
        %v197 = vld [vmem:[%s168] sm:$0xf]
        %v198 = vlaneseq
        %v199 = vand.u32 %v198, 127
        %v200 = vstv %s195
        %vm201 = vcmp.lt.s32.totalorder %v199, %v200
        %v202 = vsel %vm201, 1, 0
        %v203 = vcvt.s32.f32 %v202
        %v204 = vld [vmem:[#allocation2] sm:$0x1]
        %v205 = vsub.f32 %v196, %v197
        %v206 = vand.u32 2147483647, %v205
        %v207 = vmul.f32 %v206, %v203
        %vm208 = vcmask 125952
        %v209 = vsel %vm208, %v207, 0.0
        %210 = vadd.xlane.f32.xlu0 %v209
        %v211 = vpop.xlane.xlu0 %210
        %v212 = vrot.slane %v211, 4
        %v213 = vadd.f32 %v211, %v212
        %v214 = vrot.slane %v213, 2
        %v215 = vadd.f32 %v213, %v214
        %v216 = vrot.slane %v215, 1
        %v217 = vadd.f32 %v215, %v216
        %s218 = vtos %v217
        %v219 = vstv %s218
        %v220 = vadd.f32 %v204, %v219
        %vm221 = vcmask 0
        %222 = vst.msk [vmem:[#allocation2] sm:$0x1] %vm221, %v220
        %p223 = scmp.eq.s32.totalorder %s25, 1
        // Predicated region
        $region41: #{tpu_custom_call.1} parent=27 // pred_check
          %p224 = pneg %p223
        $region42: #{tpu_custom_call.1} parent=27 // pred_check_branch
          %226 = sbr.rel (%p224) target = $region44
        $region43: #{tpu_custom_call.1} parent=27 // pred_region
          %v227 = vld [vmem:[#allocation2] sm:$0x1]
          %228 = vst.msk [vmem:[#allocation10] sm:$0x1] %vm221, %v227
        $region44: #{tpu_custom_call.1} parent=27 // pred_fallthru
          _
        // Predicated region
        $region45: #{tpu_custom_call.1} parent=27 // pred_check
          %p229 = pneg %p90
        $region46: #{tpu_custom_call.1} parent=27 // pred_check_branch
          %231 = sbr.rel (%p229) target = $region48
        $region47: #{tpu_custom_call.1} parent=27 // pred_region
          %s233 = ssub.s32 16, 16
          %234 = vsyncadd [#allocation7], %s233
          %s236 = sshll.u32 [#allocation10], 4
          %s237 = int_to_ptr.vmem [resolvable:$true] %s236
          %239 = dma.vmem_to_hbm [thread:$0]  %s237, 16, %s3, [#allocation7]
        $region48: #{tpu_custom_call.1} parent=27 // pred_fallthru
          _
        // Predicated region
        $region49: #{tpu_custom_call.1} parent=27 // pred_check
          %p240 = pneg %p90
        $region50: #{tpu_custom_call.1} parent=27 // pred_check_branch
          %242 = sbr.rel (%p240) target = $region52
        $region51: #{tpu_custom_call.1} parent=27 // pred_region
          %243 = dma.done [#allocation7], 16
        $region52: #{tpu_custom_call.1} parent=27 // pred_fallthru
          _
      $region28: #{tpu_custom_call.1} parent=5 // pred_fallthru
        _
      %p244 = scmp.le.s32.totalorder 2, %s20
      // Predicated region
      $region53: #{tpu_custom_call.1} parent=5 // pred_check
        %p245 = pneg %p244
      $region54: #{tpu_custom_call.1} parent=5 // pred_check_branch
        %247 = sbr.rel (%p245) target = $region56
      $region55: #{tpu_custom_call.1} parent=5 // pred_region
        %s248 = ssub.s32 %s20, 2
      $region56: #{tpu_custom_call.1} parent=5 // pred_fallthru
        _
    $region6: #{tpu_custom_call.1} parent=1 // loop_footer
      %s24 = sadd.s32 1, %s20
    $region7: #{tpu_custom_call.1} parent=1 // loop_footer_branch
      %19 = sbr.rel target = $region3
    $region8: #{tpu_custom_call.1} parent=1 // loop_exit
      _
    %249 = vsyncpa [#allocation6], 1
    %s250 = scalar_lea.sflag [#allocation6], 1
    %251 = vsyncpa %s250, 1
    %252 = vsyncpa [#allocation9], 1
    %s253 = scalar_lea.sflag [#allocation9], 1
    %254 = vsyncpa %s253, 1
    %255 = vsyncpa [#allocation7], 1
    %s256 = scalar_lea.sflag [#allocation7], 1
    %257 = vsyncpa %s256, 1

</llo_original>
